<compile_context>
chip_gen: v7x
topology: tpu7x:2x2x1
jax: 0.10.0
libtpu: 0.0.40
codegen_flags: <defaults>
</compile_context>

<pallas_src>
import jax
import jax.numpy as jnp
import numpy as np
from jax.experimental import pallas as pl
from jax.experimental.pallas import tpu as pltpu

N_FEATURES = 32          # tri-plane channel count (fixed by TriPlane.__init__)
HIDDEN = 64              # OSGDecoder.hidden_dim
OUT = 1 + 32             # sigma + decoder_output_dim
W2COLS = 40              # padded second-matmul width: [rgb 0..31, sigma 32, pad 33..39]


def _osg_decoder_kernel(feat_ref, w1_ref, b1_ref, w2_ref, b2_ref, rgb_ref, sigma_ref):
    # feat_ref: (3, TM, C) in the caller's dtype.  Cast to bf16 in-kernel
    # (VPU, no extra HBM pass); plane mean is folded into W1 (already /3), so
    # the mean becomes three bf16 matmuls accumulated in f32 on the MXU.
    w1 = w1_ref[...]                                                     # (C, HIDDEN) bf16
    h = (jnp.dot(feat_ref[0].astype(jnp.bfloat16), w1, preferred_element_type=jnp.float32)
         + jnp.dot(feat_ref[1].astype(jnp.bfloat16), w1, preferred_element_type=jnp.float32)
         + jnp.dot(feat_ref[2].astype(jnp.bfloat16), w1, preferred_element_type=jnp.float32)
         + b1_ref[...])                                                  # (TM, HIDDEN) f32
    # torch.nn.Softplus (beta=1, threshold=20), f32 path
    h = jnp.where(h > 20.0, h, jnp.log1p(jnp.exp(jnp.minimum(h, 20.0))))
    # FullyConnectedLayer #2 in bf16 (f32 accumulate).  Columns are permuted
    # in the wrapper: 0..31 = rgb pre-activations, 32 = sigma, 33..39 = pad.
    y = (jnp.dot(h.astype(jnp.bfloat16), w2_ref[...],
                 preferred_element_type=jnp.float32)
         + b2_ref[...])                                                  # (TM, W2COLS) f32
    col = jax.lax.broadcasted_iota(jnp.int32, y.shape, 1)
    sig = jax.nn.sigmoid(y) * (1.0 + 2.0 * 0.001) - 0.001
    y = jnp.where(col < 32, sig, y)          # rgb activation on cols 0..31 only
    # Channel-major store: one XLU transpose (hidden under the output DMA),
    # then lane-dense slices on sublane-tile boundaries (0:32 and 32:33).
    yt = y.T                                                             # (W2COLS, TM)
    rgb_ref[...] = yt[0:32].astype(jnp.bfloat16)                         # (32, TM) bf16
    sigma_ref[...] = yt[32:33]                                           # (1, TM)  f32


def _pick_tm(M, N, target=4096):
    """Row tile: large (amortizes ~0.35us/step grid overhead), multiple of 128
    (lane-dense transposed stores) or the full extent M, and >=2 total grid
    blocks when batch == 1 so both v7x TensorCores are fed."""
    if M <= target:
        if N == 1 and M >= 256:
            return 128 * ((M + 255) // 256)      # ~M/2, multiple of 128 -> 2 row blocks
        return M                                  # single full-extent block (always legal)
    return target                                 # fits default scoped VMEM everywhere


def osg_decoder_channel_major(sampled_features, params, *, tm=None):
    """OSGDecoder.forward, channel-major outputs.

    sampled_features: (N, 3, M, 32)
      -> rgb_t   (N, 32, M) bf16   (sigmoid * 1.002 - 0.001 applied)
         sigma_t (N, 1,  M) f32    (raw pre-activation)
    """
    N, P, M, C = sampled_features.shape
    assert P == 3 and C == N_FEATURES
    if tm is None:
        tm = _pick_tm(M, N)
    assert tm == M or tm % 128 == 0, "tm must be a multiple of 128 or the full extent M"

    # Fold weight_gain = lr_multiplier / sqrt(in_features) (lr_multiplier = 1)
    # and the 1/3 plane mean into W1; transpose weights to (in, out); bf16 MXU
    # operands, f32 biases.
    w1t = (params["w1"].astype(jnp.float32) * (1.0 / (3.0 * np.sqrt(C)))).T
    w1t = w1t.astype(jnp.bfloat16)                                        # (C, HIDDEN)
    b1r = params["b1"].astype(jnp.float32).reshape(1, HIDDEN)
    w2t = (params["w2"].astype(jnp.float32) * (1.0 / np.sqrt(HIDDEN))).T  # (HIDDEN, OUT), col 0 = sigma
    w2p = jnp.zeros((HIDDEN, W2COLS), jnp.float32)
    w2p = w2p.at[:, :32].set(w2t[:, 1:OUT]).at[:, 32:33].set(w2t[:, 0:1])
    w2p = w2p.astype(jnp.bfloat16)
    b2 = params["b2"].astype(jnp.float32)
    b2p = jnp.zeros((1, W2COLS), jnp.float32)
    b2p = b2p.at[0, :32].set(b2[1:OUT]).at[0, 32].set(b2[0])

    grid = (N, pl.cdiv(M, tm))     # ragged last block: padded reads, OOB writes discarded
    itemsize = jnp.dtype(sampled_features.dtype).itemsize
    rgb_t, sigma_t = pl.pallas_call(
        _osg_decoder_kernel,
        out_shape=(jax.ShapeDtypeStruct((N, 32, M), jnp.bfloat16),
                   jax.ShapeDtypeStruct((N, 1, M), jnp.float32)),
        grid_spec=pltpu.PrefetchScalarGridSpec(
            num_scalar_prefetch=0,
            grid=grid,
            in_specs=[
                # read (N,3,M,C) directly in its native dtype -- no wrapper cast/transpose
                pl.BlockSpec((pl.Squeezed(), 3, tm, C), lambda n, i: (n, 0, i, 0)),
                pl.BlockSpec((C, HIDDEN), lambda n, i: (0, 0)),
                pl.BlockSpec((1, HIDDEN), lambda n, i: (0, 0)),
                pl.BlockSpec((HIDDEN, W2COLS), lambda n, i: (0, 0)),
                pl.BlockSpec((1, W2COLS), lambda n, i: (0, 0)),
            ],
            out_specs=(
                pl.BlockSpec((pl.Squeezed(), 32, tm), lambda n, i: (n, 0, i)),
                pl.BlockSpec((pl.Squeezed(), 1, tm), lambda n, i: (n, 0, i)),
            ),
        ),
        compiler_params=pltpu.CompilerParams(
            dimension_semantics=("parallel", "parallel"),
            vmem_limit_bytes=40 * 1024 * 1024),
        cost_estimate=pl.CostEstimate(
            flops=2 * N * M * (3 * C * HIDDEN + HIDDEN * W2COLS),
            transcendentals=N * M * (2 * HIDDEN + W2COLS),
            bytes_accessed=N * M * (3 * C * itemsize + 32 * 2 + 4)
                           + C * HIDDEN * 2 + HIDDEN * W2COLS * 2
                           + (HIDDEN + W2COLS) * 4),
    )(sampled_features, w1t, b1r, w2p, b2p)
    return rgb_t, sigma_t


def osg_decoder(sampled_features, params, *, tm=None):
    """Torch-interface OSGDecoder.forward: rgb (N, M, 32), sigma (N, M, 1).

    The synthesis path uses the channel-major outputs directly; this wrapper
    (with its transposes) exists only to mirror the PyTorch API for checks.
    """
    rgb_t, sigma_t = osg_decoder_channel_major(sampled_features, params, tm=tm)
    rgb = jnp.transpose(rgb_t, (0, 2, 1)).astype(jnp.float32)
    sigma = jnp.transpose(sigma_t, (0, 2, 1))
    return rgb, sigma


def triplane_forward(planes, c, sampled_features, params, *, resolution=8):
    """TriPlane.synthesis glue around the Pallas decoder kernel."""
    N = planes.shape[0]
    # camera parsing (matches TriPlane.synthesis; unused without a RaySampler)
    cam2world_matrix = c[:, :16].reshape(-1, 4, 4)
    intrinsics = c[:, 16:25].reshape(-1, 3, 3)
    del cam2world_matrix, intrinsics
    # plane view (matches TriPlane.synthesis)
    planes = planes.reshape(N, 3, N_FEATURES, planes.shape[-2], planes.shape[-1])
    # TODO(synk): ImportanceRenderer / RaySampler are not provided in the source;
    # `sampled_features` stands in for the renderer's per-ray plane samples and
    # the decoder output stands in for the volume-composited feature_samples.
    rgb_t, sigma_t = osg_decoder_channel_major(sampled_features, params)

    H = W = resolution
    # Kernel output is already channel-major -> permute/contiguous is a free reshape.
    feature_image = rgb_t.reshape(N, rgb_t.shape[1], H, W)
    depth_image = sigma_t.reshape(N, 1, H, W)
    rgb_image = feature_image[:, :3].astype(jnp.float32)
    return {"image": rgb_image, "image_depth": depth_image}


def _reference_decoder(sampled_features, params):
    """Pure-JAX f32 reference of OSGDecoder.forward for a sanity check."""
    x = sampled_features.mean(axis=1)                       # (N, M, C)
    N, M, C = x.shape
    x = x.reshape(N * M, C)
    w1 = params["w1"] * (1.0 / np.sqrt(C))
    w2 = params["w2"] * (1.0 / np.sqrt(HIDDEN))
    h = x @ w1.T + params["b1"]
    h = jnp.where(h > 20.0, h, jnp.log1p(jnp.exp(jnp.minimum(h, 20.0))))
    y = h @ w2.T + params["b2"]
    y = y.reshape(N, M, -1)
    rgb = jax.nn.sigmoid(y[..., 1:]) * (1 + 2 * 0.001) - 0.001
    sigma = y[..., 0:1]
    return rgb, sigma


if __name__ == "__main__":
    key = jax.random.PRNGKey(0)
    k_planes, k_c, k_feat, k_w1, k_w2, k_dirs = jax.random.split(key, 6)

    N = 2                 # batch
    H = W = 8             # small neural rendering resolution
    M = H * W             # rays (one sample per ray for this synthetic setup)
    PH = PW = 16          # plane spatial size

    # TriPlane inputs
    planes = jax.random.normal(k_planes, (N, 3 * N_FEATURES, PH, PW), jnp.float32)
    c = jax.random.normal(k_c, (N, 25), jnp.float32)
    # renderer stand-in: per-ray features sampled from the 3 planes
    sampled_features = jax.random.normal(k_feat, (N, 3, M, N_FEATURES), jnp.float32)
    ray_directions = jax.random.normal(k_dirs, (N, M, 3), jnp.float32)  # unused by decoder (linear path)
    del ray_directions

    # OSGDecoder parameters (torch.randn weights, zero biases; lr_multiplier=1)
    params = {
        "w1": jax.random.normal(k_w1, (HIDDEN, N_FEATURES), jnp.float32),
        "b1": jnp.zeros((HIDDEN,), jnp.float32),
        "w2": jax.random.normal(k_w2, (OUT, HIDDEN), jnp.float32),
        "b2": jnp.zeros((OUT,), jnp.float32),
    }

    out = triplane_forward(planes, c, sampled_features, params, resolution=H)
    jax.block_until_ready(out)
    assert out["image"].shape == (N, 3, H, W)
    assert out["image_depth"].shape == (N, 1, H, W)

    # correctness check of the Pallas decoder against a pure-JAX f32 reference
    rgb_k, sigma_k = osg_decoder(sampled_features, params)
    rgb_r, sigma_r = _reference_decoder(sampled_features, params)
    np.testing.assert_allclose(np.asarray(rgb_k), np.asarray(rgb_r), rtol=1e-2, atol=1e-2)
    np.testing.assert_allclose(np.asarray(sigma_k), np.asarray(sigma_r), rtol=1e-2, atol=1e-2)

    print("KERNEL_OK")
</pallas_src>

<mosaic_0001>
module attributes {stable_mosaic.version = 11 : i64} {
  func.func @_osg_decoder_kernel(%arg0: i32, %arg1: i32, %arg2: memref<1x3x64x32xf32, #tpu.memory_space<vmem>>, %arg3: memref<32x64xbf16, #tpu.memory_space<vmem>>, %arg4: memref<1x64xf32, #tpu.memory_space<vmem>>, %arg5: memref<64x40xbf16, #tpu.memory_space<vmem>>, %arg6: memref<1x40xf32, #tpu.memory_space<vmem>>, %arg7: memref<1x32x64xbf16, #tpu.memory_space<vmem>>, %arg8: memref<1x1x64xf32, #tpu.memory_space<vmem>>) attributes {dimension_semantics = [#tpu.dimension_semantics<parallel>, #tpu.dimension_semantics<parallel>], iteration_bounds = array<i64: 2, 1>, scalar_prefetch = 0 : i64, scratch_operands = 0 : i64, tpu.core_type = #tpu.core_type<tc>, window_params = [{transform_indices = @transform_0, window_bounds = array<i64: 1, 3, 64, 32>}, {pipeline_mode = #tpu.pipeline_mode<synchronous>, transform_indices = @transform_1, window_bounds = array<i64: 32, 64>}, {pipeline_mode = #tpu.pipeline_mode<synchronous>, transform_indices = @transform_2, window_bounds = array<i64: 1, 64>}, {pipeline_mode = #tpu.pipeline_mode<synchronous>, transform_indices = @transform_3, window_bounds = array<i64: 64, 40>}, {pipeline_mode = #tpu.pipeline_mode<synchronous>, transform_indices = @transform_4, window_bounds = array<i64: 1, 40>}, {transform_indices = @transform_5, window_bounds = array<i64: 1, 32, 64>}, {transform_indices = @transform_6, window_bounds = array<i64: 1, 1, 64>}]} {
    %c0 = arith.constant 0 : index
    %c0_0 = arith.constant 0 : index
    %0 = vector.load %arg3[%c0, %c0_0] : memref<32x64xbf16, #tpu.memory_space<vmem>>, vector<32x64xbf16>
    %c0_1 = arith.constant 0 : index
    %c0_2 = arith.constant 0 : index
    %c0_3 = arith.constant 0 : index
    %c0_4 = arith.constant 0 : index
    %1 = vector.load %arg2[%c0_1, %c0_2, %c0_3, %c0_4] : memref<1x3x64x32xf32, #tpu.memory_space<vmem>>, vector<1x1x64x32xf32>
    %2 = vector.shape_cast %1 : vector<1x1x64x32xf32> to vector<64x32xf32>
    %3 = arith.truncf %2 : vector<64x32xf32> to vector<64x32xbf16>
    %cst = arith.constant dense<0.000000e+00> : vector<64x64xf32>
    %4 = tpu.matmul %3, %0, %cst {dimension_numbers = #tpu.dot_dimension_numbers<[1], [0], [0], [1], [0, 0, 1, 1], [], []>} : vector<64x32xbf16>, vector<32x64xbf16>, vector<64x64xf32> -> vector<64x64xf32>
    %c0_5 = arith.constant 0 : index
    %c1 = arith.constant 1 : index
    %c0_6 = arith.constant 0 : index
    %c0_7 = arith.constant 0 : index
    %5 = vector.load %arg2[%c0_5, %c1, %c0_6, %c0_7] : memref<1x3x64x32xf32, #tpu.memory_space<vmem>>, vector<1x1x64x32xf32>
    %6 = vector.shape_cast %5 : vector<1x1x64x32xf32> to vector<64x32xf32>
    %7 = arith.truncf %6 : vector<64x32xf32> to vector<64x32xbf16>
    %cst_8 = arith.constant dense<0.000000e+00> : vector<64x64xf32>
    %8 = tpu.matmul %7, %0, %cst_8 {dimension_numbers = #tpu.dot_dimension_numbers<[1], [0], [0], [1], [0, 0, 1, 1], [], []>} : vector<64x32xbf16>, vector<32x64xbf16>, vector<64x64xf32> -> vector<64x64xf32>
    %9 = arith.addf %4, %8 : vector<64x64xf32>
    %c0_9 = arith.constant 0 : index
    %c2 = arith.constant 2 : index
    %c0_10 = arith.constant 0 : index
    %c0_11 = arith.constant 0 : index
    %10 = vector.load %arg2[%c0_9, %c2, %c0_10, %c0_11] : memref<1x3x64x32xf32, #tpu.memory_space<vmem>>, vector<1x1x64x32xf32>
    %11 = vector.shape_cast %10 : vector<1x1x64x32xf32> to vector<64x32xf32>
    %12 = arith.truncf %11 : vector<64x32xf32> to vector<64x32xbf16>
    %cst_12 = arith.constant dense<0.000000e+00> : vector<64x64xf32>
    %13 = tpu.matmul %12, %0, %cst_12 {dimension_numbers = #tpu.dot_dimension_numbers<[1], [0], [0], [1], [0, 0, 1, 1], [], []>} : vector<64x32xbf16>, vector<32x64xbf16>, vector<64x64xf32> -> vector<64x64xf32>
    %14 = arith.addf %9, %13 : vector<64x64xf32>
    %c0_13 = arith.constant 0 : index
    %c0_14 = arith.constant 0 : index
    %15 = vector.load %arg4[%c0_13, %c0_14] : memref<1x64xf32, #tpu.memory_space<vmem>>, vector<1x64xf32>
    %16 = vector.broadcast %15 : vector<1x64xf32> to vector<64x64xf32>
    %17 = arith.addf %14, %16 : vector<64x64xf32>
    %cst_15 = arith.constant 2.000000e+01 : f32
    %18 = vector.broadcast %cst_15 : f32 to vector<64x64xf32>
    %19 = arith.cmpf ogt, %17, %18 : vector<64x64xf32>
    %cst_16 = arith.constant 2.000000e+01 : f32
    %20 = vector.broadcast %cst_16 : f32 to vector<64x64xf32>
    %21 = arith.minimumf %17, %20 : vector<64x64xf32>
    %22 = math.exp %21 : vector<64x64xf32>
    %23 = math.log1p %22 : vector<64x64xf32>
    %24 = arith.select %19, %17, %23 : vector<64x64xi1>, vector<64x64xf32>
    %25 = arith.truncf %24 : vector<64x64xf32> to vector<64x64xbf16>
    %c0_17 = arith.constant 0 : index
    %c0_18 = arith.constant 0 : index
    %26 = vector.load %arg5[%c0_17, %c0_18] : memref<64x40xbf16, #tpu.memory_space<vmem>>, vector<64x40xbf16>
    %cst_19 = arith.constant dense<0.000000e+00> : vector<64x40xf32>
    %27 = tpu.matmul %25, %26, %cst_19 {dimension_numbers = #tpu.dot_dimension_numbers<[1], [0], [0], [1], [0, 0, 1, 1], [], []>} : vector<64x64xbf16>, vector<64x40xbf16>, vector<64x40xf32> -> vector<64x40xf32>
    %c0_20 = arith.constant 0 : index
    %c0_21 = arith.constant 0 : index
    %28 = vector.load %arg6[%c0_20, %c0_21] : memref<1x40xf32, #tpu.memory_space<vmem>>, vector<1x40xf32>
    %29 = vector.broadcast %28 : vector<1x40xf32> to vector<64x40xf32>
    %30 = arith.addf %27, %29 : vector<64x40xf32>
    %31 = tpu.iota {dimensions = array<i32: 1>} : vector<64x40xi32>
    %32 = arith.negf %30 : vector<64x40xf32>
    %33 = math.exp %32 : vector<64x40xf32>
    %cst_22 = arith.constant 1.000000e+00 : f32
    %34 = vector.broadcast %cst_22 : f32 to vector<64x40xf32>
    %35 = arith.addf %34, %33 : vector<64x40xf32>
    %36 = arith.divf %34, %35 : vector<64x40xf32>
    %cst_23 = arith.constant 1.002000e+00 : f32
    %37 = vector.broadcast %cst_23 : f32 to vector<64x40xf32>
    %38 = arith.mulf %36, %37 : vector<64x40xf32>
    %cst_24 = arith.constant 1.000000e-03 : f32
    %39 = vector.broadcast %cst_24 : f32 to vector<64x40xf32>
    %40 = arith.subf %38, %39 : vector<64x40xf32>
    %c32_i32 = arith.constant 32 : i32
    %41 = vector.broadcast %c32_i32 : i32 to vector<64x40xi32>
    %42 = arith.cmpi slt, %31, %41 : vector<64x40xi32>
    %43 = arith.select %42, %40, %30 : vector<64x40xi1>, vector<64x40xf32>
    %44 = tpu.transpose %43, [1, 0] : vector<64x40xf32> -> vector<40x64xf32>
    %45 = vector.extract_strided_slice %44 {offsets = [0, 0], sizes = [32, 64], strides = [1, 1]} : vector<40x64xf32> to vector<32x64xf32>
    %46 = arith.truncf %45 : vector<32x64xf32> to vector<32x64xbf16>
    %c0_25 = arith.constant 0 : index
    %c0_26 = arith.constant 0 : index
    %c0_27 = arith.constant 0 : index
    %47 = vector.load %arg7[%c0_25, %c0_26, %c0_27] : memref<1x32x64xbf16, #tpu.memory_space<vmem>>, vector<1x32x64xbf16>
    %48 = vector.shape_cast %47 : vector<1x32x64xbf16> to vector<32x64xbf16>
    %49 = vector.shape_cast %46 : vector<32x64xbf16> to vector<1x32x64xbf16>
    tpu.vector_store %arg7[%c0_25, %c0_26, %c0_27], %49 {strides = array<i32>} : memref<1x32x64xbf16, #tpu.memory_space<vmem>>, vector<1x32x64xbf16>,
    %50 = vector.extract_strided_slice %44 {offsets = [32, 0], sizes = [1, 64], strides = [1, 1]} : vector<40x64xf32> to vector<1x64xf32>
    %c0_28 = arith.constant 0 : index
    %c0_29 = arith.constant 0 : index
    %c0_30 = arith.constant 0 : index
    %51 = vector.load %arg8[%c0_28, %c0_29, %c0_30] : memref<1x1x64xf32, #tpu.memory_space<vmem>>, vector<1x1x64xf32>
    %52 = vector.shape_cast %51 : vector<1x1x64xf32> to vector<1x64xf32>
    %53 = vector.shape_cast %50 : vector<1x64xf32> to vector<1x1x64xf32>
    tpu.vector_store %arg8[%c0_28, %c0_29, %c0_30], %53 {strides = array<i32>} : memref<1x1x64xf32, #tpu.memory_space<vmem>>, vector<1x1x64xf32>,
    return
  }
  func.func @transform_0(%arg0: i32, %arg1: i32) -> (i32, i32, i32, i32) {
    %c0_i32 = arith.constant 0 : i32
    %c0_i32_0 = arith.constant 0 : i32
    %c0_i32_1 = arith.constant 0 : i32
    return %arg0, %c0_i32, %arg1, %c0_i32_0 : i32, i32, i32, i32
  }
  func.func @transform_1(%arg0: i32, %arg1: i32) -> (i32, i32) {
    %c0_i32 = arith.constant 0 : i32
    %c0_i32_0 = arith.constant 0 : i32
    %c0_i32_1 = arith.constant 0 : i32
    return %c0_i32, %c0_i32_0 : i32, i32
  }
  func.func @transform_2(%arg0: i32, %arg1: i32) -> (i32, i32) {
    %c0_i32 = arith.constant 0 : i32
    %c0_i32_0 = arith.constant 0 : i32
    %c0_i32_1 = arith.constant 0 : i32
    return %c0_i32, %c0_i32_0 : i32, i32
  }
  func.func @transform_3(%arg0: i32, %arg1: i32) -> (i32, i32) {
    %c0_i32 = arith.constant 0 : i32
    %c0_i32_0 = arith.constant 0 : i32
    %c0_i32_1 = arith.constant 0 : i32
    return %c0_i32, %c0_i32_0 : i32, i32
  }
  func.func @transform_4(%arg0: i32, %arg1: i32) -> (i32, i32) {
    %c0_i32 = arith.constant 0 : i32
    %c0_i32_0 = arith.constant 0 : i32
    %c0_i32_1 = arith.constant 0 : i32
    return %c0_i32, %c0_i32_0 : i32, i32
  }
  func.func @transform_5(%arg0: i32, %arg1: i32) -> (i32, i32, i32) {
    %c0_i32 = arith.constant 0 : i32
    %c0_i32_0 = arith.constant 0 : i32
    return %arg0, %c0_i32, %arg1 : i32, i32, i32
  }
  func.func @transform_6(%arg0: i32, %arg1: i32) -> (i32, i32, i32) {
    %c0_i32 = arith.constant 0 : i32
    %c0_i32_0 = arith.constant 0 : i32
    return %arg0, %c0_i32, %arg1 : i32, i32, i32
  }
}

</mosaic_0001>

<llo_original>
// kernel: tpu_custom_call.1
$region0: #{tpu_custom_call.1}
  #allocation0 [shape = 'u32[]', space=smem, size = 0x4, offset = 0x4, fixed_abs, tag = 'smem constant byte address 0x4 - core index']
  #allocation1 [shape = 'u32[144,128]{1,0:T(1,128)}', space=vmem, size = 0x12000, scoped, tag = 'internal scratch']
  %s0 = inlined_call_operand.vmem [shape: f32[2,3,64,32], index: 0, kind: input, shape index: {}]
  %s1 = inlined_call_operand.vmem [shape: bf16[32,64], index: 1, kind: input, shape index: {}]
  %s2 = inlined_call_operand.vmem [shape: f32[1,64], index: 2, kind: input, shape index: {}]
  %s3 = inlined_call_operand.vmem [shape: bf16[64,40], index: 3, kind: input, shape index: {}]
  %s4 = inlined_call_operand.vmem [shape: f32[1,40], index: 4, kind: input, shape index: {}]
  %s5 = inlined_call_operand.hbm [shape: bf16[2,32,64], index: 5, kind: output, shape index: {0}]
  %s6 = inlined_call_operand.hbm [shape: f32[2,1,64], index: 6, kind: output, shape index: {1}]
  %7 = xla_tuple %s5, %s6
  %s8 = sld [smem:[#allocation0]]
  $region61: #{tpu_custom_call.1} parent=0
    _
  %s10 = ssub.s32 1, %s8
  %s11 = scalar_select 0, %s10, %s8
  $region1: #{tpu_custom_call.1} parent=0
    #allocation2 [shape = 'u8[16384]{0}', space=vmem, size = 0x4000, scoped, tag = 'output window, operand 0']
    #allocation3 [shape = 's32[2]{0}', space=sflag, size = 0x8, scoped, tag = 'scoped memory for tpu_custom_call.1']
    #allocation4 [shape = 'u8[1024]{0}', space=vmem, size = 0x400, scoped, tag = 'output window, operand 1']
    #allocation5 [shape = 's32[2]{0}', space=sflag, size = 0x8, scoped, tag = 'scoped memory for tpu_custom_call.1']
    %12 = vsyncpa [#allocation3], 0
    %s13 = scalar_lea.sflag [#allocation3], 1
    %14 = vsyncpa %s13, 0
    %15 = vsyncpa [#allocation5], 0
    %s16 = scalar_lea.sflag [#allocation5], 1
    %17 = vsyncpa %s16, 0
    loop: start=0, step=1, limit=4
    $region2: #{tpu_custom_call.1} parent=1 // loop_pre_header
      _
    $region3: #{tpu_custom_call.1} parent=1 // loop_header
      %s19 = sphi 0, %s23
      %p20 = scmp.ge.s32.totalorder %s19, 4
      %s26 = sphi 0, %s38
      %s27 = sphi 0, %s34
      %s28 = sphi 0, %s26
      %s29 = sphi 0, %s27
      %s30 = sphi 0, %s28
      %s31 = sphi 0, %s29
      %s43 = sphi 0, %s45
      %s46 = sphi 0, %s43
      %s47 = sphi 0, %s46
      %s63 = sphi 0, %s47
      %s67 = sphi 0, %s67
      %s69 = sphi 0, %s67
      %s70 = sphi 0, %s69
      %s84 = sphi 0, %s70
      %s88 = sphi 0, %s88
      %s90 = sphi 0, %s88
      %s91 = sphi 0, %s90
      %s105 = sphi 0, %s91
      %s109 = sphi 0, %s109
      %s111 = sphi 0, %s109
      %s112 = sphi 0, %s111
      %s126 = sphi 0, %s112
      %s130 = sphi 0, %s130
      %s132 = sphi 0, %s130
      %s133 = sphi 0, %s132
      %s147 = sphi 0, %s133
      %s155 = sphi 0, %s157
      %s158 = sphi 0, %s155
      %s159 = sphi 0, %s158
      %s175 = sphi 0, %s159
      %s183 = sphi 0, %s185
      %s186 = sphi 0, %s183
      %s187 = sphi 0, %s186
      %s203 = sphi 0, %s187
    $region4: #{tpu_custom_call.1} parent=1 // loop_header_branch
      %22 = sbr.rel (%p20) target = $region8
    $region5: #{tpu_custom_call.1} parent=1 // loop_body
      %s24 = ssub.s32 %s19, 1
      %s25 = ssub.s32 %s19, 2
      %s32 = sadd.s32 1, %s27
      %p33 = scmp.ge.s32.totalorder %s32, 1
      %s34 = scalar_select %p33, 0, %s32
      %s35 = sadd.s32 1, %s26
      %s36 = scalar_select %p33, %s35, %s26
      %p37 = scmp.ge.s32.totalorder %s36, 2
      %s38 = scalar_select %p37, 0, %s36
      %s39 = ssub.s32 %s26, %s38
      %s40 = ssub.s32 %s27, %s34
      %s41 = sor.u32 %s39, %s40
      %p42 = scmp.eq.s32.totalorder %s41, 0
      %s44 = sadd.s32 %s43, 1
      %s45 = scalar_select %p42, %s43, %s44
      %p48 = pneg %p42
      %p49 = scmp.eq.s32.totalorder %s19, 1
      %p50 = por %p48, %p49
      %p51 = scmp.ne.s32.totalorder %s43, %s46
      %p52 = scmp.eq.s32.totalorder %s19, 0
      %p53 = por %p51, %p52
      %p54 = scmp.ne.s32.totalorder %s43, %s46
      %p55 = scmp.eq.s32.totalorder %s24, 1
      %p56 = por %p54, %p55
      %p57 = scmp.ne.s32.totalorder %s46, %s47
      %p58 = scmp.eq.s32.totalorder %s24, 0
      %p59 = por %p57, %p58
      %p60 = scmp.ne.s32.totalorder %s46, %s47
      %p61 = scmp.eq.s32.totalorder %s25, 1
      %p62 = por %p60, %p61
      %p64 = scmp.ne.s32.totalorder %s47, %s63
      %p65 = scmp.eq.s32.totalorder %s25, 0
      %p66 = por %p64, %p65
      %s68 = sadd.s32 %s67, 1
      %p71 = scmp.eq.s32.totalorder %s19, 1
      %p72 = scmp.ne.s32.totalorder %s67, %s69
      %p73 = scmp.eq.s32.totalorder %s19, 0
      %p74 = por %p72, %p73
      %p75 = scmp.ne.s32.totalorder %s67, %s69
      %p76 = scmp.eq.s32.totalorder %s24, 1
      %p77 = por %p75, %p76
      %p78 = scmp.ne.s32.totalorder %s69, %s70
      %p79 = scmp.eq.s32.totalorder %s24, 0
      %p80 = por %p78, %p79
      %p81 = scmp.ne.s32.totalorder %s69, %s70
      %p82 = scmp.eq.s32.totalorder %s25, 1
      %p83 = por %p81, %p82
      %p85 = scmp.ne.s32.totalorder %s70, %s84
      %p86 = scmp.eq.s32.totalorder %s25, 0
      %p87 = por %p85, %p86
      %s89 = sadd.s32 %s88, 1
      %p92 = scmp.eq.s32.totalorder %s19, 1
      %p93 = scmp.ne.s32.totalorder %s88, %s90
      %p94 = scmp.eq.s32.totalorder %s19, 0
      %p95 = por %p93, %p94
      %p96 = scmp.ne.s32.totalorder %s88, %s90
      %p97 = scmp.eq.s32.totalorder %s24, 1
      %p98 = por %p96, %p97
      %p99 = scmp.ne.s32.totalorder %s90, %s91
      %p100 = scmp.eq.s32.totalorder %s24, 0
      %p101 = por %p99, %p100
      %p102 = scmp.ne.s32.totalorder %s90, %s91
      %p103 = scmp.eq.s32.totalorder %s25, 1
      %p104 = por %p102, %p103
      %p106 = scmp.ne.s32.totalorder %s91, %s105
      %p107 = scmp.eq.s32.totalorder %s25, 0
      %p108 = por %p106, %p107
      %s110 = sadd.s32 %s109, 1
      %p113 = scmp.eq.s32.totalorder %s19, 1
      %p114 = scmp.ne.s32.totalorder %s109, %s111
      %p115 = scmp.eq.s32.totalorder %s19, 0
      %p116 = por %p114, %p115
      %p117 = scmp.ne.s32.totalorder %s109, %s111
      %p118 = scmp.eq.s32.totalorder %s24, 1
      %p119 = por %p117, %p118
      %p120 = scmp.ne.s32.totalorder %s111, %s112
      %p121 = scmp.eq.s32.totalorder %s24, 0
      %p122 = por %p120, %p121
      %p123 = scmp.ne.s32.totalorder %s111, %s112
      %p124 = scmp.eq.s32.totalorder %s25, 1
      %p125 = por %p123, %p124
      %p127 = scmp.ne.s32.totalorder %s112, %s126
      %p128 = scmp.eq.s32.totalorder %s25, 0
      %p129 = por %p127, %p128
      %s131 = sadd.s32 %s130, 1
      %p134 = scmp.eq.s32.totalorder %s19, 1
      %p135 = scmp.ne.s32.totalorder %s130, %s132
      %p136 = scmp.eq.s32.totalorder %s19, 0
      %p137 = por %p135, %p136
      %p138 = scmp.ne.s32.totalorder %s130, %s132
      %p139 = scmp.eq.s32.totalorder %s24, 1
      %p140 = por %p138, %p139
      %p141 = scmp.ne.s32.totalorder %s132, %s133
      %p142 = scmp.eq.s32.totalorder %s24, 0
      %p143 = por %p141, %p142
      %p144 = scmp.ne.s32.totalorder %s132, %s133
      %p145 = scmp.eq.s32.totalorder %s25, 1
      %p146 = por %p144, %p145
      %p148 = scmp.ne.s32.totalorder %s133, %s147
      %p149 = scmp.eq.s32.totalorder %s25, 0
      %p150 = por %p148, %p149
      %s151 = ssub.s32 %s26, %s38
      %s152 = ssub.s32 %s27, %s34
      %s153 = sor.u32 %s151, %s152
      %p154 = scmp.eq.s32.totalorder %s153, 0
      %s156 = sadd.s32 %s155, 1
      %s157 = scalar_select %p154, %s155, %s156
      %p160 = pneg %p154
      %p161 = scmp.eq.s32.totalorder %s19, 1
      %p162 = por %p160, %p161
      %p163 = scmp.ne.s32.totalorder %s155, %s158
      %p164 = scmp.eq.s32.totalorder %s19, 0
      %p165 = por %p163, %p164
      %p166 = scmp.ne.s32.totalorder %s155, %s158
      %p167 = scmp.eq.s32.totalorder %s24, 1
      %p168 = por %p166, %p167
      %p169 = scmp.ne.s32.totalorder %s158, %s159
      %p170 = scmp.eq.s32.totalorder %s24, 0
      %p171 = por %p169, %p170
      %p172 = scmp.ne.s32.totalorder %s158, %s159
      %p173 = scmp.eq.s32.totalorder %s25, 1
      %p174 = por %p172, %p173
      %p176 = scmp.ne.s32.totalorder %s159, %s175
      %p177 = scmp.eq.s32.totalorder %s25, 0
      %p178 = por %p176, %p177
      %s179 = ssub.s32 %s26, %s38
      %s180 = ssub.s32 %s27, %s34
      %s181 = sor.u32 %s179, %s180
      %p182 = scmp.eq.s32.totalorder %s181, 0
      %s184 = sadd.s32 %s183, 1
      %s185 = scalar_select %p182, %s183, %s184
      %p188 = pneg %p182
      %p189 = scmp.eq.s32.totalorder %s19, 1
      %p190 = por %p188, %p189
      %p191 = scmp.ne.s32.totalorder %s183, %s186
      %p192 = scmp.eq.s32.totalorder %s19, 0
      %p193 = por %p191, %p192
      %p194 = scmp.ne.s32.totalorder %s183, %s186
      %p195 = scmp.eq.s32.totalorder %s24, 1
      %p196 = por %p194, %p195
      %p197 = scmp.ne.s32.totalorder %s186, %s187
      %p198 = scmp.eq.s32.totalorder %s24, 0
      %p199 = por %p197, %p198
      %p200 = scmp.ne.s32.totalorder %s186, %s187
      %p201 = scmp.eq.s32.totalorder %s25, 1
      %p202 = por %p200, %p201
      %p204 = scmp.ne.s32.totalorder %s187, %s203
      %p205 = scmp.eq.s32.totalorder %s25, 0
      %p206 = por %p204, %p205
      %p207 = scmp.le.s32.totalorder 1, %s19
      %p208 = scmp.lt.s32.totalorder %s19, 3
      %p209 = pnand %p207, %p208
      %p210 = pneg %p209
      // Predicated region
      $region9: #{tpu_custom_call.1} parent=5 // pred_check
        _
      $region10: #{tpu_custom_call.1} parent=5 // pred_check_branch
        %212 = sbr.rel (%p209) target = $region12
      $region11: #{tpu_custom_call.1} parent=5 // pred_region
        %s213 = ssub.s32 %s19, 1
        // Predicated region
        $region13: #{tpu_custom_call.1} parent=11 // pred_check
          %p214 = pneg %p80
        $region14: #{tpu_custom_call.1} parent=11 // pred_check_branch
          %216 = sbr.rel (%p214) target = $region16
        $region15: #{tpu_custom_call.1} parent=11 // pred_region
          _
        $region16: #{tpu_custom_call.1} parent=11 // pred_fallthru
          _
        // Predicated region
        $region17: #{tpu_custom_call.1} parent=11 // pred_check
          %p217 = pneg %p101
        $region18: #{tpu_custom_call.1} parent=11 // pred_check_branch
          %219 = sbr.rel (%p217) target = $region20
        $region19: #{tpu_custom_call.1} parent=11 // pred_region
          _
        $region20: #{tpu_custom_call.1} parent=11 // pred_fallthru
          _
        // Predicated region
        $region21: #{tpu_custom_call.1} parent=11 // pred_check
          %p220 = pneg %p122
        $region22: #{tpu_custom_call.1} parent=11 // pred_check_branch
          %222 = sbr.rel (%p220) target = $region24
        $region23: #{tpu_custom_call.1} parent=11 // pred_region
          _
        $region24: #{tpu_custom_call.1} parent=11 // pred_fallthru
          _
        // Predicated region
        $region25: #{tpu_custom_call.1} parent=11 // pred_check
          %p223 = pneg %p143
        $region26: #{tpu_custom_call.1} parent=11 // pred_check_branch
          %225 = sbr.rel (%p223) target = $region28
        $region27: #{tpu_custom_call.1} parent=11 // pred_region
          _
        $region28: #{tpu_custom_call.1} parent=11 // pred_fallthru
          _
      $region12: #{tpu_custom_call.1} parent=5 // pred_fallthru
        _
      %p226 = scmp.lt.s32.totalorder %s19, 2
      // Predicated region
      $region29: #{tpu_custom_call.1} parent=5 // pred_check
        %p227 = pneg %p226
      $region30: #{tpu_custom_call.1} parent=5 // pred_check_branch
        %229 = sbr.rel (%p227) target = $region32
      $region31: #{tpu_custom_call.1} parent=5 // pred_region
        // Predicated region
        $region33: #{tpu_custom_call.1} parent=31 // pred_check
          %p230 = pneg %p53
        $region34: #{tpu_custom_call.1} parent=31 // pred_check_branch
          %232 = sbr.rel (%p230) target = $region36
        $region35: #{tpu_custom_call.1} parent=31 // pred_region
          %s233 = smul.u32 8, %s27
          %p234 = scmp.lt.s32.totalorder %s26, 1
          %s235 = scalar_select %p234, %s26, 1
          %p236 = scmp.lt.s32.totalorder %s233, 7
          %s237 = scalar_select %p236, %s233, 7
          %s238 = smul.addr %s235, 24
          %s239 = sadd.s32 %s237, %s238
          %s240 = smul.addr %s239, 8
          %s241 = scalar_lea.vmem %s0, %s240
          %s242 = smul.u32 8, %s27
        $region36: #{tpu_custom_call.1} parent=31 // pred_fallthru
          _
      $region32: #{tpu_custom_call.1} parent=5 // pred_fallthru
        _
      %p243 = scmp.le.s32.totalorder 1, %s19
      %p244 = scmp.lt.s32.totalorder %s19, 3
      %p245 = pnand %p243, %p244
      %p246 = pneg %p245
      // Predicated region
      $region37: #{tpu_custom_call.1} parent=5 // pred_check
        _
      $region38: #{tpu_custom_call.1} parent=5 // pred_check_branch
        %248 = sbr.rel (%p245) target = $region40
      $region39: #{tpu_custom_call.1} parent=5 // pred_region
        %s249 = ssub.s32 %s19, 1
        %s250 = smul.u32 8, %s29
        %p251 = scmp.lt.s32.totalorder %s28, 1
        %s252 = scalar_select %p251, %s28, 1
        %p253 = scmp.lt.s32.totalorder %s250, 7
        %s254 = scalar_select %p253, %s250, 7
        %s255 = smul.addr %s252, 24
        %s256 = sadd.s32 %s254, %s255
        %s257 = smul.addr %s256, 8
        %s258 = scalar_lea.vmem %s0, %s257
        %p259 = pneg %p59
        %p260 = pneg %p56
        %p261 = pneg %p80
        %p262 = pneg %p77
        %p263 = pneg %p101
        %p264 = pneg %p98
        %p265 = pneg %p122
        %p266 = pneg %p119
        %p267 = pneg %p143
        %p268 = pneg %p140
        %p269 = pneg %p171
        %p270 = pneg %p168
        %s271 = sand.u32 %s158, 1
        %s272 = scalar_lea.sflag [#allocation3], %s271
        %s273 = sand.u32 %s158, 1
        %s274 = smul.addr %s273, 16
        %s275 = scalar_lea.vmem [#allocation2], %s274
        %p276 = pneg %p199
        %p277 = pneg %p196
        %s278 = sand.u32 %s186, 1
        %s279 = scalar_lea.sflag [#allocation5], %s278
        %s280 = sand.u32 %s186, 1
        %s281 = scalar_lea.vmem [#allocation4], %s280
        %s282 = smul.u32 8, %s29
        %p283 = scmp.lt.s32.totalorder %s28, 1
        %s284 = scalar_select %p283, %s28, 1
        %p285 = scmp.lt.s32.totalorder %s282, 7
        %s286 = scalar_select %p285, %s282, 7
        %s287 = smul.addr %s284, 24
        %s288 = sadd.s32 %s286, %s287
        %s289 = smul.addr %s288, 8
        %s290 = scalar_lea.vmem %s0, %s289
        %s291 = smul.u32 8, %s29
        %v293 = vld [vmem:[%s1] sm:$0xf]
        %v294 = vld [vmem:[%s1 + $0x4] sm:$0xf]
        %v295 = vld [vmem:[%s1 + $0x8] sm:$0xf]
        %v296 = vld [vmem:[%s1 + $0xc] sm:$0xf]
        %v297 = vld [vmem:[%s290] sm:$0xff]
        %v298 = vld [vmem:[%s290 + $0x8] sm:$0xff]
        %v299 = vld [vmem:[%s290 + $0x10] sm:$0xff]
        %v300 = vld [vmem:[%s290 + $0x18] sm:$0xff]
        %v301 = vld [vmem:[%s290 + $0x20] sm:$0xff]
        %v302 = vld [vmem:[%s290 + $0x28] sm:$0xff]
        %v303 = vld [vmem:[%s290 + $0x30] sm:$0xff]
        %v304 = vld [vmem:[%s290 + $0x38] sm:$0xff]
        %v305 = vpack.c.bf16 %v298, %v297
        %v306 = vpack.c.bf16 %v300, %v299
        %v307 = vpack.c.bf16 %v302, %v301
        %v308 = vpack.c.bf16 %v304, %v303
        %s309 = scalar_lea.vmem %s290, 64
        %v310 = vld [vmem:[%s309] sm:$0xff]
        %v311 = vld [vmem:[%s309 + $0x8] sm:$0xff]
        %v312 = vld [vmem:[%s309 + $0x10] sm:$0xff]
        %v313 = vld [vmem:[%s309 + $0x18] sm:$0xff]
        %v314 = vld [vmem:[%s309 + $0x20] sm:$0xff]
        %v315 = vld [vmem:[%s309 + $0x28] sm:$0xff]
        %v316 = vld [vmem:[%s309 + $0x30] sm:$0xff]
        %v317 = vld [vmem:[%s309 + $0x38] sm:$0xff]
        %v318 = vpack.c.bf16 %v311, %v310
        %v319 = vpack.c.bf16 %v313, %v312
        %v320 = vpack.c.bf16 %v315, %v314
        %v321 = vpack.c.bf16 %v317, %v316
        %v326 = vunpack.c.l.b16 %v293
        %v327 = vunpack.c.l.b16 %v294
        %v328 = vunpack.c.l.b16 %v295
        %v329 = vunpack.c.l.b16 %v296
        %v330 = vpack.c.b16 %v327, %v326
        %v331 = vpack.c.b16 %v329, %v328
        %vm334 = vcmask 261120
        %v336 = vsel %vm334, %v318, 0
        %v339 = vsel %vm334, %v319, 0
        %v342 = vsel %vm334, %v320, 0
        %v345 = vsel %vm334, %v321, 0
        %347 = vmatprep.subr.bf16.mxu0 0
        %348 = vmatpush1.bf16.msra.mxu0 %v330
        %349 = vmatprep.subr.bf16.mxu0 0
        %350 = vmatpush1.bf16.msra.mxu0 %v331
        %351 = vmatprep.subr.bf16.mxu0 0
        %352 = vmatpush1.bf16.msra.mxu0 0
        %353 = vmatprep.subr.bf16.mxu0 0
        %354 = vmatpush1.bf16.msra.mxu0 0
        %355 = vmatprep.subr.bf16.mxu0 0
        %356 = vmatpush1.bf16.msra.mxu0 0
        %357 = vmatprep.subr.bf16.mxu0 0
        %358 = vmatpush1.bf16.msra.mxu0 0
        %359 = vmatprep.subr.bf16.mxu0 0
        %360 = vmatpush1.bf16.msra.mxu0 0
        %361 = vmatprep.subr.bf16.mxu0 0
        %362 = vmatpush1.bf16.msra.mxu0 0
        %363 = vmatprep.subr.bf16.mxu0 0
        %364 = vmatpush1.bf16.msra.mxu0 0
        %365 = vmatprep.subr.bf16.mxu0 0
        %366 = vmatpush1.bf16.msra.mxu0 0
        %367 = vmatprep.subr.bf16.mxu0 0
        %368 = vmatpush1.bf16.msra.mxu0 0
        %369 = vmatprep.subr.bf16.mxu0 0
        %370 = vmatpush1.bf16.msra.mxu0 0
        %371 = vmatprep.subr.bf16.mxu0 0
        %372 = vmatpush1.bf16.msra.mxu0 0
        %373 = vmatprep.subr.bf16.mxu0 0
        %374 = vmatpush1.bf16.msra.mxu0 0
        %375 = vmatprep.subr.bf16.mxu0 0
        %376 = vmatpush1.bf16.msra.mxu0 0
        %377 = vmatprep.subr.bf16.mxu0 0
        %378 = vmatpush1.bf16.msra.mxu0 0
        %379 = vmatprep.mubr.bf16.mxu0 0
        %380 = vmatmul.mubr.bf16.gmra.mrb[0].mxu0 %v336
        %v381 = vpop.f32.mrb[0].mxu0
        %v382 = vadd.f32 0.0, %v381
        %v383 = vpop.f32.mrb[0].mxu0
        %v384 = vpop.f32.mrb[0].mxu0
        %v385 = vadd.f32 0.0, %v384
        %v386 = vpop.f32.mrb[0].mxu0
        %387 = vmatprep.mubr.bf16.mxu0 0
        %388 = vmatmul.mubr.bf16.gmra.mrb[0].mxu0 %v339
        %v389 = vpop.f32.mrb[0].mxu0
        %v390 = vadd.f32 0.0, %v389
        %v391 = vpop.f32.mrb[0].mxu0
        %v392 = vpop.f32.mrb[0].mxu0
        %v393 = vadd.f32 0.0, %v392
        %v394 = vpop.f32.mrb[0].mxu0
        %395 = vmatprep.mubr.bf16.mxu0 0
        %396 = vmatmul.mubr.bf16.gmra.mrb[0].mxu0 %v342
        %v397 = vpop.f32.mrb[0].mxu0
        %v398 = vadd.f32 0.0, %v397
        %v399 = vpop.f32.mrb[0].mxu0
        %v400 = vpop.f32.mrb[0].mxu0
        %v401 = vadd.f32 0.0, %v400
        %v402 = vpop.f32.mrb[0].mxu0
        %403 = vmatprep.mubr.bf16.mxu0 0
        %404 = vmatmul.mubr.bf16.gmra.mrb[0].mxu0 %v345
        %v405 = vpop.f32.mrb[0].mxu0
        %v406 = vadd.f32 0.0, %v405
        %v407 = vpop.f32.mrb[0].mxu0
        %v408 = vpop.f32.mrb[0].mxu0
        %v409 = vadd.f32 0.0, %v408
        %v410 = vpop.f32.mrb[0].mxu0
        %411 = vdwg.mxu0
        %v413 = vsel %vm334, %v305, 0
        %v416 = vsel %vm334, %v306, 0
        %v419 = vsel %vm334, %v307, 0
        %v422 = vsel %vm334, %v308, 0
        %424 = vmatprep.subr.bf16.mxu0 0
        %425 = vmatpush1.bf16.msra.mxu0 %v330
        %426 = vmatprep.subr.bf16.mxu0 0
        %427 = vmatpush1.bf16.msra.mxu0 %v331
        %428 = vmatprep.subr.bf16.mxu0 0
        %429 = vmatpush1.bf16.msra.mxu0 0
        %430 = vmatprep.subr.bf16.mxu0 0
        %431 = vmatpush1.bf16.msra.mxu0 0
        %432 = vmatprep.subr.bf16.mxu0 0
        %433 = vmatpush1.bf16.msra.mxu0 0
        %434 = vmatprep.subr.bf16.mxu0 0
        %435 = vmatpush1.bf16.msra.mxu0 0
        %436 = vmatprep.subr.bf16.mxu0 0
        %437 = vmatpush1.bf16.msra.mxu0 0
        %438 = vmatprep.subr.bf16.mxu0 0
        %439 = vmatpush1.bf16.msra.mxu0 0
        %440 = vmatprep.subr.bf16.mxu0 0
        %441 = vmatpush1.bf16.msra.mxu0 0
        %442 = vmatprep.subr.bf16.mxu0 0
        %443 = vmatpush1.bf16.msra.mxu0 0
        %444 = vmatprep.subr.bf16.mxu0 0
        %445 = vmatpush1.bf16.msra.mxu0 0
        %446 = vmatprep.subr.bf16.mxu0 0
        %447 = vmatpush1.bf16.msra.mxu0 0
        %448 = vmatprep.subr.bf16.mxu0 0
        %449 = vmatpush1.bf16.msra.mxu0 0
        %450 = vmatprep.subr.bf16.mxu0 0
        %451 = vmatpush1.bf16.msra.mxu0 0
        %452 = vmatprep.subr.bf16.mxu0 0
        %453 = vmatpush1.bf16.msra.mxu0 0
        %454 = vmatprep.subr.bf16.mxu0 0
        %455 = vmatpush1.bf16.msra.mxu0 0
        %456 = vmatprep.mubr.bf16.mxu0 0
        %457 = vmatmul.mubr.bf16.gmra.mrb[0].mxu0 %v413
        %v458 = vpop.f32.mrb[0].mxu0
        %v459 = vadd.f32 %v382, %v458
        %v460 = vpop.f32.mrb[0].mxu0
        %v461 = vpop.f32.mrb[0].mxu0
        %v462 = vadd.f32 %v385, %v461
        %v463 = vpop.f32.mrb[0].mxu0
        %464 = vmatprep.mubr.bf16.mxu0 0
        %465 = vmatmul.mubr.bf16.gmra.mrb[0].mxu0 %v416
        %v466 = vpop.f32.mrb[0].mxu0
        %v467 = vadd.f32 %v390, %v466
        %v468 = vpop.f32.mrb[0].mxu0
        %v469 = vpop.f32.mrb[0].mxu0
        %v470 = vadd.f32 %v393, %v469
        %v471 = vpop.f32.mrb[0].mxu0
        %472 = vmatprep.mubr.bf16.mxu0 0
        %473 = vmatmul.mubr.bf16.gmra.mrb[0].mxu0 %v419
        %v474 = vpop.f32.mrb[0].mxu0
        %v475 = vadd.f32 %v398, %v474
        %v476 = vpop.f32.mrb[0].mxu0
        %v477 = vpop.f32.mrb[0].mxu0
        %v478 = vadd.f32 %v401, %v477
        %v479 = vpop.f32.mrb[0].mxu0
        %480 = vmatprep.mubr.bf16.mxu0 0
        %481 = vmatmul.mubr.bf16.gmra.mrb[0].mxu0 %v422
        %v482 = vpop.f32.mrb[0].mxu0
        %v483 = vadd.f32 %v406, %v482
        %v484 = vpop.f32.mrb[0].mxu0
        %v485 = vpop.f32.mrb[0].mxu0
        %v486 = vadd.f32 %v409, %v485
        %v487 = vpop.f32.mrb[0].mxu0
        %488 = vdwg.mxu0
        %s489 = scalar_lea.vmem %s290, 128
        %v490 = vld [vmem:[%s489] sm:$0xff]
        %v491 = vld [vmem:[%s489 + $0x8] sm:$0xff]
        %v492 = vld [vmem:[%s489 + $0x10] sm:$0xff]
        %v493 = vld [vmem:[%s489 + $0x18] sm:$0xff]
        %v494 = vld [vmem:[%s489 + $0x20] sm:$0xff]
        %v495 = vld [vmem:[%s489 + $0x28] sm:$0xff]
        %v496 = vld [vmem:[%s489 + $0x30] sm:$0xff]
        %v497 = vld [vmem:[%s489 + $0x38] sm:$0xff]
        %v498 = vpack.c.bf16 %v491, %v490
        %v499 = vpack.c.bf16 %v493, %v492
        %v500 = vpack.c.bf16 %v495, %v494
        %v501 = vpack.c.bf16 %v497, %v496
        %v503 = vsel %vm334, %v498, 0
        %v506 = vsel %vm334, %v499, 0
        %v509 = vsel %vm334, %v500, 0
        %v512 = vsel %vm334, %v501, 0
        %514 = vmatprep.subr.bf16.mxu0 0
        %515 = vmatpush1.bf16.msra.mxu0 %v330
        %516 = vmatprep.subr.bf16.mxu0 0
        %517 = vmatpush1.bf16.msra.mxu0 %v331
        %518 = vmatprep.subr.bf16.mxu0 0
        %519 = vmatpush1.bf16.msra.mxu0 0
        %520 = vmatprep.subr.bf16.mxu0 0
        %521 = vmatpush1.bf16.msra.mxu0 0
        %522 = vmatprep.subr.bf16.mxu0 0
        %523 = vmatpush1.bf16.msra.mxu0 0
        %524 = vmatprep.subr.bf16.mxu0 0
        %525 = vmatpush1.bf16.msra.mxu0 0
        %526 = vmatprep.subr.bf16.mxu0 0
        %527 = vmatpush1.bf16.msra.mxu0 0
        %528 = vmatprep.subr.bf16.mxu0 0
        %529 = vmatpush1.bf16.msra.mxu0 0
        %530 = vmatprep.subr.bf16.mxu0 0
        %531 = vmatpush1.bf16.msra.mxu0 0
        %532 = vmatprep.subr.bf16.mxu0 0
        %533 = vmatpush1.bf16.msra.mxu0 0
        %534 = vmatprep.subr.bf16.mxu0 0
        %535 = vmatpush1.bf16.msra.mxu0 0
        %536 = vmatprep.subr.bf16.mxu0 0
        %537 = vmatpush1.bf16.msra.mxu0 0
        %538 = vmatprep.subr.bf16.mxu0 0
        %539 = vmatpush1.bf16.msra.mxu0 0
        %540 = vmatprep.subr.bf16.mxu0 0
        %541 = vmatpush1.bf16.msra.mxu0 0
        %542 = vmatprep.subr.bf16.mxu0 0
        %543 = vmatpush1.bf16.msra.mxu0 0
        %544 = vmatprep.subr.bf16.mxu0 0
        %545 = vmatpush1.bf16.msra.mxu0 0
        %546 = vmatprep.mubr.bf16.mxu0 0
        %547 = vmatmul.mubr.bf16.gmra.mrb[0].mxu0 %v503
        %v548 = vpop.f32.mrb[0].mxu0
        %v549 = vadd.f32 0.0, %v548
        %v550 = vpop.f32.mrb[0].mxu0
        %v551 = vpop.f32.mrb[0].mxu0
        %v552 = vadd.f32 0.0, %v551
        %v553 = vpop.f32.mrb[0].mxu0
        %554 = vmatprep.mubr.bf16.mxu0 0
        %555 = vmatmul.mubr.bf16.gmra.mrb[0].mxu0 %v506
        %v556 = vpop.f32.mrb[0].mxu0
        %v557 = vadd.f32 0.0, %v556
        %v558 = vpop.f32.mrb[0].mxu0
        %v559 = vpop.f32.mrb[0].mxu0
        %v560 = vadd.f32 0.0, %v559
        %v561 = vpop.f32.mrb[0].mxu0
        %562 = vmatprep.mubr.bf16.mxu0 0
        %563 = vmatmul.mubr.bf16.gmra.mrb[0].mxu0 %v509
        %v564 = vpop.f32.mrb[0].mxu0
        %v565 = vadd.f32 0.0, %v564
        %v566 = vpop.f32.mrb[0].mxu0
        %v567 = vpop.f32.mrb[0].mxu0
        %v568 = vadd.f32 0.0, %v567
        %v569 = vpop.f32.mrb[0].mxu0
        %570 = vmatprep.mubr.bf16.mxu0 0
        %571 = vmatmul.mubr.bf16.gmra.mrb[0].mxu0 %v512
        %v572 = vpop.f32.mrb[0].mxu0
        %v573 = vadd.f32 0.0, %v572
        %v574 = vpop.f32.mrb[0].mxu0
        %v575 = vpop.f32.mrb[0].mxu0
        %v576 = vadd.f32 0.0, %v575
        %v577 = vpop.f32.mrb[0].mxu0
        %578 = vdwg.mxu0
        %v579 = vadd.f32 %v459, %v549
        %v580 = vadd.f32 %v462, %v552
        %v581 = vadd.f32 %v467, %v557
        %v582 = vadd.f32 %v470, %v560
        %v583 = vadd.f32 %v475, %v565
        %v584 = vadd.f32 %v478, %v568
        %v585 = vadd.f32 %v483, %v573
        %v586 = vadd.f32 %v486, %v576
        %v587 = vld [vmem:[%s2] sm:$0x1]
        %v589 = vlaneseq
        %v590 = vshrl.u32 %v589, 7
        %v591 = vsub.s32 0, %v590
        %v592 = vrot.slane %v587, %v591
        %v594 = vadd.f32 %v579, %v592
        %v595 = vadd.f32 %v580, %v592
        %v596 = vadd.f32 %v581, %v592
        %v597 = vadd.f32 %v582, %v592
        %v598 = vadd.f32 %v583, %v592
        %v599 = vadd.f32 %v584, %v592
        %v600 = vadd.f32 %v585, %v592
        %v601 = vadd.f32 %v586, %v592
        %vm602 = vcmp.gt.f32.partialorder %v594, 20.0
        %vm603 = vcmp.gt.f32.partialorder %v595, 20.0
        %vm604 = vcmp.gt.f32.partialorder %v596, 20.0
        %vm605 = vcmp.gt.f32.partialorder %v597, 20.0
        %vm606 = vcmp.gt.f32.partialorder %v598, 20.0
        %vm607 = vcmp.gt.f32.partialorder %v599, 20.0
        %vm608 = vcmp.gt.f32.partialorder %v600, 20.0
        %vm609 = vcmp.gt.f32.partialorder %v601, 20.0
        %v610 = vmin.f32 %v594, 20.0
        %v611 = vmin.f32 %v595, 20.0
        %v612 = vmin.f32 %v596, 20.0
        %v613 = vmin.f32 %v597, 20.0
        %v614 = vmin.f32 %v598, 20.0
        %v615 = vmin.f32 %v599, 20.0
        %v616 = vmin.f32 %v600, 20.0
        %v617 = vmin.f32 %v601, 20.0
        %v618 = vmul.f32 %v610, 1.442695
        %v619 = vpow.pop %v618
        %v620 = vmul.f32 %v611, 1.442695
        %v621 = vpow.pop %v620
        %v622 = vmul.f32 %v612, 1.442695
        %v623 = vpow.pop %v622
        %v624 = vmul.f32 %v613, 1.442695
        %v625 = vpow.pop %v624
        %v626 = vmul.f32 %v614, 1.442695
        %v627 = vpow.pop %v626
        %v628 = vmul.f32 %v615, 1.442695
        %v629 = vpow.pop %v628
        %v630 = vmul.f32 %v616, 1.442695
        %v631 = vpow.pop %v630
        %v632 = vmul.f32 %v617, 1.442695
        %v633 = vpow.pop %v632
        %v634 = vadd.f32 %v619, 1.0
        %v635 = vlog2.pop %v634
        %v636 = vmul.f32 %v635, 0.6931472
        %v637 = vmul.f32 -0.5, %v619
        %v638 = vadd.f32 %v637, 1.0
        %v639 = vmul.f32 %v638, %v619
        %v640 = vand.u32 2147483647, %v619
        %vm641 = vcmp.lt.f32.partialorder %v640, 0.0004427343
        %v642 = vsel %vm641, %v639, %v636
        %v643 = vadd.f32 %v621, 1.0
        %v644 = vlog2.pop %v643
        %v645 = vmul.f32 %v644, 0.6931472
        %v646 = vmul.f32 -0.5, %v621
        %v647 = vadd.f32 %v646, 1.0
        %v648 = vmul.f32 %v647, %v621
        %v649 = vand.u32 2147483647, %v621
        %vm650 = vcmp.lt.f32.partialorder %v649, 0.0004427343
        %v651 = vsel %vm650, %v648, %v645
        %v652 = vadd.f32 %v623, 1.0
        %v653 = vlog2.pop %v652
        %v654 = vmul.f32 %v653, 0.6931472
        %v655 = vmul.f32 -0.5, %v623
        %v656 = vadd.f32 %v655, 1.0
        %v657 = vmul.f32 %v656, %v623
        %v658 = vand.u32 2147483647, %v623
        %vm659 = vcmp.lt.f32.partialorder %v658, 0.0004427343
        %v660 = vsel %vm659, %v657, %v654
        %v661 = vadd.f32 %v625, 1.0
        %v662 = vlog2.pop %v661
        %v663 = vmul.f32 %v662, 0.6931472
        %v664 = vmul.f32 -0.5, %v625
        %v665 = vadd.f32 %v664, 1.0
        %v666 = vmul.f32 %v665, %v625
        %v667 = vand.u32 2147483647, %v625
        %vm668 = vcmp.lt.f32.partialorder %v667, 0.0004427343
        %v669 = vsel %vm668, %v666, %v663
        %v670 = vadd.f32 %v627, 1.0
        %v671 = vlog2.pop %v670
        %v672 = vmul.f32 %v671, 0.6931472
        %v673 = vmul.f32 -0.5, %v627
        %v674 = vadd.f32 %v673, 1.0
        %v675 = vmul.f32 %v674, %v627
        %v676 = vand.u32 2147483647, %v627
        %vm677 = vcmp.lt.f32.partialorder %v676, 0.0004427343
        %v678 = vsel %vm677, %v675, %v672
        %v679 = vadd.f32 %v629, 1.0
        %v680 = vlog2.pop %v679
        %v681 = vmul.f32 %v680, 0.6931472
        %v682 = vmul.f32 -0.5, %v629
        %v683 = vadd.f32 %v682, 1.0
        %v684 = vmul.f32 %v683, %v629
        %v685 = vand.u32 2147483647, %v629
        %vm686 = vcmp.lt.f32.partialorder %v685, 0.0004427343
        %v687 = vsel %vm686, %v684, %v681
        %v688 = vadd.f32 %v631, 1.0
        %v689 = vlog2.pop %v688
        %v690 = vmul.f32 %v689, 0.6931472
        %v691 = vmul.f32 -0.5, %v631
        %v692 = vadd.f32 %v691, 1.0
        %v693 = vmul.f32 %v692, %v631
        %v694 = vand.u32 2147483647, %v631
        %vm695 = vcmp.lt.f32.partialorder %v694, 0.0004427343
        %v696 = vsel %vm695, %v693, %v690
        %v697 = vadd.f32 %v633, 1.0
        %v698 = vlog2.pop %v697
        %v699 = vmul.f32 %v698, 0.6931472
        %v700 = vmul.f32 -0.5, %v633
        %v701 = vadd.f32 %v700, 1.0
        %v702 = vmul.f32 %v701, %v633
        %v703 = vand.u32 2147483647, %v633
        %vm704 = vcmp.lt.f32.partialorder %v703, 0.0004427343
        %v705 = vsel %vm704, %v702, %v699
        %v706 = vsel %vm602, %v594, %v642
        %v707 = vsel %vm603, %v595, %v651
        %v708 = vsel %vm604, %v596, %v660
        %v709 = vsel %vm605, %v597, %v669
        %v710 = vsel %vm606, %v598, %v678
        %v711 = vsel %vm607, %v599, %v687
        %v712 = vsel %vm608, %v600, %v696
        %v713 = vsel %vm609, %v601, %v705
        %v714 = vpack.c.bf16 %v707, %v706
        %v715 = vpack.c.bf16 %v709, %v708
        %v716 = vpack.c.bf16 %v711, %v710
        %v717 = vpack.c.bf16 %v713, %v712
        %v718 = vld [vmem:[%s3] sm:$0xf]
        %v719 = vld [vmem:[%s3 + $0x4] sm:$0xf]
        %v720 = vld [vmem:[%s3 + $0x8] sm:$0xf]
        %v721 = vld [vmem:[%s3 + $0xc] sm:$0xf]
        %v722 = vld [vmem:[%s3 + $0x10] sm:$0xf]
        %v723 = vld [vmem:[%s3 + $0x14] sm:$0xf]
        %v724 = vld [vmem:[%s3 + $0x18] sm:$0xf]
        %v725 = vld [vmem:[%s3 + $0x1c] sm:$0xf]
        %v726 = vld [vmem:[%s4] sm:$0x1]
        %v728 = vlaneseq
        %v729 = vshrl.u32 %v728, 7
        %v730 = vsub.s32 0, %v729
        %v731 = vrot.slane %v726, %v730
        %v741 = vunpack.c.l.b16 %v718
        %v742 = vunpack.c.l.b16 %v719
        %v743 = vunpack.c.l.b16 %v720
        %v744 = vunpack.c.l.b16 %v721
        %v745 = vunpack.c.l.b16 %v722
        %v746 = vunpack.c.l.b16 %v723
        %v747 = vunpack.c.l.b16 %v724
        %v748 = vunpack.c.l.b16 %v725
        %v749 = vpack.c.b16 %v742, %v741
        %v750 = vpack.c.b16 %v744, %v743
        %v751 = vpack.c.b16 %v746, %v745
        %v752 = vpack.c.b16 %v748, %v747
        %vm757 = vcmask 523264
        %v759 = vsel %vm757, %v714, 0
        %v762 = vsel %vm757, %v715, 0
        %v765 = vsel %vm757, %v716, 0
        %v768 = vsel %vm757, %v717, 0
        %770 = vmatprep.subr.bf16.mxu0 0
        %771 = vmatpush1.bf16.msra.mxu0 %v749
        %772 = vmatprep.subr.bf16.mxu0 0
        %773 = vmatpush1.bf16.msra.mxu0 %v750
        %774 = vmatprep.subr.bf16.mxu0 0
        %775 = vmatpush1.bf16.msra.mxu0 %v751
        %776 = vmatprep.subr.bf16.mxu0 0
        %777 = vmatpush1.bf16.msra.mxu0 %v752
        %778 = vmatprep.subr.bf16.mxu0 0
        %779 = vmatpush1.bf16.msra.mxu0 0
        %780 = vmatprep.subr.bf16.mxu0 0
        %781 = vmatpush1.bf16.msra.mxu0 0
        %782 = vmatprep.subr.bf16.mxu0 0
        %783 = vmatpush1.bf16.msra.mxu0 0
        %784 = vmatprep.subr.bf16.mxu0 0
        %785 = vmatpush1.bf16.msra.mxu0 0
        %786 = vmatprep.subr.bf16.mxu0 0
        %787 = vmatpush1.bf16.msra.mxu0 0
        %788 = vmatprep.subr.bf16.mxu0 0
        %789 = vmatpush1.bf16.msra.mxu0 0
        %790 = vmatprep.subr.bf16.mxu0 0
        %791 = vmatpush1.bf16.msra.mxu0 0
        %792 = vmatprep.subr.bf16.mxu0 0
        %793 = vmatpush1.bf16.msra.mxu0 0
        %794 = vmatprep.subr.bf16.mxu0 0
        %795 = vmatpush1.bf16.msra.mxu0 0
        %796 = vmatprep.subr.bf16.mxu0 0
        %797 = vmatpush1.bf16.msra.mxu0 0
        %798 = vmatprep.subr.bf16.mxu0 0
        %799 = vmatpush1.bf16.msra.mxu0 0
        %800 = vmatprep.subr.bf16.mxu0 0
        %801 = vmatpush1.bf16.msra.mxu0 0
        %802 = vmatprep.mubr.bf16.mxu0 0
        %803 = vmatmul.mubr.bf16.gmra.mrb[0].mxu0 %v759
        %v804 = vpop.f32.mrb[0].mxu0
        %v805 = vadd.f32 %v731, %v804
        %v806 = vpop.f32.mrb[0].mxu0
        %v807 = vpop.f32.mrb[0].mxu0
        %v808 = vadd.f32 %v731, %v807
        %v809 = vpop.f32.mrb[0].mxu0
        %810 = vmatprep.mubr.bf16.mxu0 0
        %811 = vmatmul.mubr.bf16.gmra.mrb[0].mxu0 %v762
        %v812 = vpop.f32.mrb[0].mxu0
        %v813 = vadd.f32 %v731, %v812
        %v814 = vpop.f32.mrb[0].mxu0
        %v815 = vpop.f32.mrb[0].mxu0
        %v816 = vadd.f32 %v731, %v815
        %v817 = vpop.f32.mrb[0].mxu0
        %818 = vmatprep.mubr.bf16.mxu0 0
        %819 = vmatmul.mubr.bf16.gmra.mrb[0].mxu0 %v765
        %v820 = vpop.f32.mrb[0].mxu0
        %v821 = vadd.f32 %v731, %v820
        %v822 = vpop.f32.mrb[0].mxu0
        %v823 = vpop.f32.mrb[0].mxu0
        %v824 = vadd.f32 %v731, %v823
        %v825 = vpop.f32.mrb[0].mxu0
        %826 = vmatprep.mubr.bf16.mxu0 0
        %827 = vmatmul.mubr.bf16.gmra.mrb[0].mxu0 %v768
        %v828 = vpop.f32.mrb[0].mxu0
        %v829 = vadd.f32 %v731, %v828
        %v830 = vpop.f32.mrb[0].mxu0
        %v831 = vpop.f32.mrb[0].mxu0
        %v832 = vadd.f32 %v731, %v831
        %v833 = vpop.f32.mrb[0].mxu0
        %834 = vdwg.mxu0
        %v835 = vlaneseq
        %v836 = vand.u32 %v835, 127
        %v837 = vxor.u32 %v805, 2147483648
        %v838 = vxor.u32 %v808, 2147483648
        %v839 = vxor.u32 %v813, 2147483648
        %v840 = vxor.u32 %v816, 2147483648
        %v841 = vxor.u32 %v821, 2147483648
        %v842 = vxor.u32 %v824, 2147483648
        %v843 = vxor.u32 %v829, 2147483648
        %v844 = vxor.u32 %v832, 2147483648
        %v845 = vmul.f32 %v837, 1.442695
        %v846 = vpow.pop %v845
        %v847 = vmul.f32 %v838, 1.442695
        %v848 = vpow.pop %v847
        %v849 = vmul.f32 %v839, 1.442695
        %v850 = vpow.pop %v849
        %v851 = vmul.f32 %v840, 1.442695
        %v852 = vpow.pop %v851
        %v853 = vmul.f32 %v841, 1.442695
        %v854 = vpow.pop %v853
        %v855 = vmul.f32 %v842, 1.442695
        %v856 = vpow.pop %v855
        %v857 = vmul.f32 %v843, 1.442695
        %v858 = vpow.pop %v857
        %v859 = vmul.f32 %v844, 1.442695
        %v860 = vpow.pop %v859
        %v861 = vadd.f32 %v846, 1.0
        %v862 = vadd.f32 %v848, 1.0
        %v863 = vadd.f32 %v850, 1.0
        %v864 = vadd.f32 %v852, 1.0
        %v865 = vadd.f32 %v854, 1.0
        %v866 = vadd.f32 %v856, 1.0
        %v867 = vadd.f32 %v858, 1.0
        %v868 = vadd.f32 %v860, 1.0
        %v869 = vrcp.pop %v861
        %v870 = vmul.f32 1.0, %v869
        %v871 = vrcp.pop %v862
        %v872 = vmul.f32 1.0, %v871
        %v873 = vrcp.pop %v863
        %v874 = vmul.f32 1.0, %v873
        %v875 = vrcp.pop %v864
        %v876 = vmul.f32 1.0, %v875
        %v877 = vrcp.pop %v865
        %v878 = vmul.f32 1.0, %v877
        %v879 = vrcp.pop %v866
        %v880 = vmul.f32 1.0, %v879
        %v881 = vrcp.pop %v867
        %v882 = vmul.f32 1.0, %v881
        %v883 = vrcp.pop %v868
        %v884 = vmul.f32 1.0, %v883
        %v885 = vmul.f32 %v870, 1.002
        %v886 = vmul.f32 %v872, 1.002
        %v887 = vmul.f32 %v874, 1.002
        %v888 = vmul.f32 %v876, 1.002
        %v889 = vmul.f32 %v878, 1.002
        %v890 = vmul.f32 %v880, 1.002
        %v891 = vmul.f32 %v882, 1.002
        %v892 = vmul.f32 %v884, 1.002
        %v893 = vsub.f32 %v885, 0.001
        %v894 = vsub.f32 %v886, 0.001
        %v895 = vsub.f32 %v887, 0.001
        %v896 = vsub.f32 %v888, 0.001
        %v897 = vsub.f32 %v889, 0.001
        %v898 = vsub.f32 %v890, 0.001
        %v899 = vsub.f32 %v891, 0.001
        %v900 = vsub.f32 %v892, 0.001
        %vm901 = vcmp.lt.s32.totalorder %v836, 32
        %v902 = vsel %vm901, %v893, %v805
        %v903 = vsel %vm901, %v894, %v808
        %v904 = vsel %vm901, %v895, %v813
        %v905 = vsel %vm901, %v896, %v816
        %v906 = vsel %vm901, %v897, %v821
        %v907 = vsel %vm901, %v898, %v824
        %v908 = vsel %vm901, %v899, %v829
        %v909 = vsel %vm901, %v900, %v832
        %910 = vxpose.xlu0.b32.start [1/16] %v902, 128
        %911 = vxpose.xlu0.b32.cont [2/16] %v903, 128
        %912 = vxpose.xlu0.b32.cont [3/16] %v904, 128
        %913 = vxpose.xlu0.b32.cont [4/16] %v905, 128
        %914 = vxpose.xlu0.b32.cont [5/16] %v906, 128
        %915 = vxpose.xlu0.b32.cont [6/16] %v907, 128
        %916 = vxpose.xlu0.b32.cont [7/16] %v908, 128
        %917 = vxpose.xlu0.b32.cont [8/16] %v909, 128
        %918 = vxpose.xlu0.b32.cont [9/16] 0.0, 128
        %919 = vxpose.xlu0.b32.cont [10/16] 0.0, 128
        %920 = vxpose.xlu0.b32.cont [11/16] 0.0, 128
        %921 = vxpose.xlu0.b32.cont [12/16] 0.0, 128
        %922 = vxpose.xlu0.b32.cont [13/16] 0.0, 128
        %923 = vxpose.xlu0.b32.cont [14/16] 0.0, 128
        %924 = vxpose.xlu0.b32.cont [15/16] 0.0, 128
        %925 = vxpose.xlu0.b32.end [16/16] 0.0, 128
        %v926 = vpop.trf.xlu0
        %v927 = vpop.trf.xlu0
        %v928 = vpop.trf.xlu0
        %v929 = vpop.trf.xlu0
        %v930 = vpop.trf.xlu0
        %v931 = vpop.trf.xlu0
        %v932 = vpop.trf.xlu0
        %v933 = vpop.trf.xlu0
        %v934 = vpop.trf.xlu0
        %v935 = vpop.trf.xlu0
        %v936 = vpop.trf.xlu0
        %v937 = vpop.trf.xlu0
        %v938 = vpop.trf.xlu0
        %v939 = vpop.trf.xlu0
        %v940 = vpop.trf.xlu0
        %v941 = vpop.trf.xlu0
        %v942 = vpack.c.bf16 %v927, %v926
        %v943 = vpack.c.bf16 %v929, %v928
        %v946 = vunpack.c.l.b16 %v942
        %v947 = vunpack.c.h.b16 %v942
        %v948 = vunpack.c.l.b16 %v943
        %v949 = vunpack.c.h.b16 %v943
        %v950 = vpack.c.b16 %v946, %v946
        %v951 = vpack.c.b16 %v947, %v947
        %v952 = vpack.c.b16 %v948, %v948
        %v953 = vpack.c.b16 %v949, %v949
        %vm958 = vcmask 519168
        %959 = vst.msk [vmem:[%s275] sm:$0xf] %vm958, %v950
        %960 = vst.msk [vmem:[%s275 + $0x4] sm:$0xf] %vm958, %v951
        %961 = vst.msk [vmem:[%s275 + $0x8] sm:$0xf] %vm958, %v952
        %962 = vst.msk [vmem:[%s275 + $0xc] sm:$0xf] %vm958, %v953
        %vm963 = vcmask 516096
        %964 = vst.msk [vmem:[%s281] sm:$0x1] %vm963, %v930
        %s965 = sand.u32 %s158, 1
        %s966 = scalar_lea.sflag [#allocation3], %s965
        %s967 = sand.u32 %s158, 1
        %s968 = smul.addr %s967, 16
        %s969 = scalar_lea.vmem [#allocation2], %s968
        %s970 = sand.u32 %s186, 1
        %s971 = scalar_lea.sflag [#allocation5], %s970
        %s972 = sand.u32 %s186, 1
        %s973 = scalar_lea.vmem [#allocation4], %s972
        // Predicated region
        $region41: #{tpu_custom_call.1} parent=39 // pred_check
          %p974 = pneg %p168
        $region42: #{tpu_custom_call.1} parent=39 // pred_check_branch
          %976 = sbr.rel (%p974) target = $region44
        $region43: #{tpu_custom_call.1} parent=39 // pred_region
          %s978 = ssub.s32 256, 256
          %979 = vsyncadd %s966, %s978
          %s980 = smul.addr %s28, 4
          %s981 = sadd.s32 %s29, %s980
          %s982 = smul.addr %s981, 64
          %s983 = scalar_lea.hbm %s5, %s982
          %s984 = sshll.u32 %s969, 4
          %s985 = int_to_ptr.vmem [resolvable:$true] %s984
          %990 = dma.vmem_to_hbm [thread:$0]  %s985, 256, %s983, %s966, 64, 64, 4
        $region44: #{tpu_custom_call.1} parent=39 // pred_fallthru
          _
        // Predicated region
        $region45: #{tpu_custom_call.1} parent=39 // pred_check
          %p991 = pneg %p196
        $region46: #{tpu_custom_call.1} parent=39 // pred_check_branch
          %993 = sbr.rel (%p991) target = $region48
        $region47: #{tpu_custom_call.1} parent=39 // pred_region
          %s995 = ssub.s32 16, 16
          %996 = vsyncadd %s971, %s995
          %s997 = sadd.s32 %s29, %s28
          %s998 = smul.addr %s997, 16
          %s999 = scalar_lea.hbm %s6, %s998
          %s1001 = sshll.u32 %s973, 4
          %s1002 = int_to_ptr.vmem [resolvable:$true] %s1001
          %1004 = dma.vmem_to_hbm [thread:$0]  %s1002, 16, %s999, %s971
        $region48: #{tpu_custom_call.1} parent=39 // pred_fallthru
          _
      $region40: #{tpu_custom_call.1} parent=5 // pred_fallthru
        _
      %p1005 = scmp.le.s32.totalorder 2, %s19
      // Predicated region
      $region49: #{tpu_custom_call.1} parent=5 // pred_check
        %p1006 = pneg %p1005
      $region50: #{tpu_custom_call.1} parent=5 // pred_check_branch
        %1008 = sbr.rel (%p1006) target = $region52
      $region51: #{tpu_custom_call.1} parent=5 // pred_region
        %s1009 = ssub.s32 %s19, 2
        // Predicated region
        $region53: #{tpu_custom_call.1} parent=51 // pred_check
          %p1010 = pneg %p174
        $region54: #{tpu_custom_call.1} parent=51 // pred_check_branch
          %1012 = sbr.rel (%p1010) target = $region56
        $region55: #{tpu_custom_call.1} parent=51 // pred_region
          %s1013 = sand.u32 %s159, 1
          %s1014 = scalar_lea.sflag [#allocation3], %s1013
          %s1015 = sand.u32 %s159, 1
          %s1016 = smul.addr %s1015, 16
          %s1017 = scalar_lea.vmem [#allocation2], %s1016
          %1018 = dma.done %s1014, 256
        $region56: #{tpu_custom_call.1} parent=51 // pred_fallthru
          _
        // Predicated region
        $region57: #{tpu_custom_call.1} parent=51 // pred_check
          %p1019 = pneg %p202
        $region58: #{tpu_custom_call.1} parent=51 // pred_check_branch
          %1021 = sbr.rel (%p1019) target = $region60
        $region59: #{tpu_custom_call.1} parent=51 // pred_region
          %s1022 = sand.u32 %s187, 1
          %s1023 = scalar_lea.sflag [#allocation5], %s1022
          %s1024 = sand.u32 %s187, 1
          %s1025 = scalar_lea.vmem [#allocation4], %s1024
          %1026 = dma.done %s1023, 16
        $region60: #{tpu_custom_call.1} parent=51 // pred_fallthru
          _
      $region52: #{tpu_custom_call.1} parent=5 // pred_fallthru
        _
    $region6: #{tpu_custom_call.1} parent=1 // loop_footer
      %s23 = sadd.s32 1, %s19
    $region7: #{tpu_custom_call.1} parent=1 // loop_footer_branch
      %18 = sbr.rel target = $region3
    $region8: #{tpu_custom_call.1} parent=1 // loop_exit
      _
    %1027 = vsyncpa [#allocation3], 1
    %s1028 = scalar_lea.sflag [#allocation3], 1
    %1029 = vsyncpa %s1028, 1
    %1030 = vsyncpa [#allocation5], 1
    %s1031 = scalar_lea.sflag [#allocation5], 1
    %1032 = vsyncpa %s1031, 1

</llo_original>
